<compile_context>
chip_gen: v7x
topology: tpu7x:2x2x1
jax: 0.10.0
libtpu: 0.0.40
codegen_flags: <defaults>
</compile_context>

<pallas_src>
import functools

import jax
import jax.numpy as jnp
from jax.experimental import pallas as pl
from jax.experimental.pallas import tpu as pltpu


# ----------------------------------------------------------------------------
# Kernel
# ----------------------------------------------------------------------------
def _focal_loss_kernel(x_ref, y_ref, out_ref, acc_ref, *,
                       gamma, alpha, n_rows, tile_n, steps_per_core):
    i = pl.program_id(0)   # partition (TensorCore) index
    j = pl.program_id(1)   # row-tile step within this partition

    @pl.when(j == 0)
    def _init():
        acc_ref[...] = jnp.zeros_like(acc_ref)

    x = x_ref[...].astype(jnp.float32)           # (TN, C)
    y = y_ref[...].astype(jnp.int32)             # (TN, 1)

    # Log-space target probability (no full-width softmax divide, no log(0)).
    m = jnp.max(x, axis=1, keepdims=True)                            # (TN, 1)
    lse = m + jnp.log(jnp.sum(jnp.exp(x - m), axis=1, keepdims=True))
    col = jax.lax.broadcasted_iota(jnp.int32, x.shape, 1)
    x_t = jnp.sum(jnp.where(col == y, x, 0.0), axis=1, keepdims=True)

    # Clamp so p_t cannot exceed 1.0 by an ulp (pow(negative, frac) -> NaN).
    log_p_t = jnp.minimum(x_t - lse, 0.0)                            # (TN, 1)
    p_t = jnp.exp(log_p_t)
    one_minus = jnp.maximum(1.0 - p_t, 0.0)

    g = float(gamma)
    if g == int(g) and 0 <= int(g) <= 4:
        # Small integer gamma -> plain multiplies (VALU) instead of pow (EUP).
        w = jnp.ones_like(one_minus)
        for _ in range(int(g)):
            w = w * one_minus
    else:
        w = jnp.power(one_minus, jnp.float32(g))

    fl = (-alpha) * w * log_p_t                                      # (TN, 1)

    # Logical (unclamped) tile index; also covers duplicated tiles from the
    # clamped index_map on the second partition.
    t = i * steps_per_core + j
    tile_is_partial = (t + 1) * tile_n > n_rows

    @pl.when(jnp.logical_not(tile_is_partial))
    def _acc_full():
        acc_ref[...] = acc_ref[...] + fl

    @pl.when(tile_is_partial)
    def _acc_tail():
        # Select (not multiply) so NaN/Inf from undefined edge rows is dropped.
        row = t * tile_n + jax.lax.broadcasted_iota(jnp.int32, (tile_n, 1), 0)
        acc_ref[...] = acc_ref[...] + jnp.where(row < n_rows, fl, 0.0)

    @pl.when(j == pl.num_programs(1) - 1)
    def _finalize():
        partial = jnp.sum(acc_ref[...], axis=0, keepdims=True)       # (1, 1)
        out_ref[...] = partial.reshape(1, 1, 1)


# ----------------------------------------------------------------------------
# Sizing / generation-aware configuration
# ----------------------------------------------------------------------------
def _round_up(v, m):
    return ((v + m - 1) // m) * m


def _vmem_limit_bytes():
    """Scoped-VMEM limit derived from the chip's VMEM capacity."""
    cap = None
    try:
        cap = int(pltpu.get_tpu_info().vmem_capacity_bytes)
    except Exception:
        cap = None
    if not cap or cap <= 0:
        cap = 64 * 1024 * 1024           # conservative (v7x per-TC size)
    # Use at most half of physical VMEM, and never more than 64 MiB:
    #   v5e/v6e (128 MiB) -> 64 MiB, v7x (64 MiB) / unknown -> 32 MiB.
    return int(min(max(cap // 2, 16 * 1024 * 1024), 64 * 1024 * 1024))


def _num_partitions_default():
    """2 only on v7x (two TensorCores); 1 on v5e/v6e where a second 'parallel'
    partition is just a duplicated serial loop."""
    try:
        kind = jax.devices()[0].device_kind.lower()
    except Exception:
        return 1
    return 2 if "v7" in kind else 1


def _default_tile_n(n_rows, n_classes, itemsize, vmem_limit):
    """Row tile sized from the lane-padded VMEM footprint of one grid step."""
    lanes = _round_up(max(n_classes, 1), 128)
    row_x_in = lanes * max(int(itemsize), 2)   # x block row in VMEM (padded)
    row_f32 = lanes * 4                        # f32 block temporaries
    row_y = 128 * 4                            # y block row (lane-padded int32)
    # 2x double-buffered x, 2x double-buffered y, ~4 f32 block temps
    # (astype, x - m, exp, where) and the (tile, 1) f32 accumulator.
    per_row = 2 * row_x_in + 2 * row_y + 4 * row_f32 + 128 * 4
    tile = int(0.45 * vmem_limit) // per_row
    # HBM roofline is reached with x blocks of ~1-4 MiB; bigger only eats VMEM.
    tile = min(tile, (4 * 1024 * 1024) // max(row_x_in, 1))
    tile = max(8, (tile // 8) * 8)
    # No point in a tile larger than N (rounded up to a sublane multiple).
    tile = min(tile, max(8, _round_up(n_rows, 8)))
    return tile


# ----------------------------------------------------------------------------
# Wrapper
# ----------------------------------------------------------------------------
def focal_loss(x, y, *, gamma, alpha=1.0, reduce='mean',
               tile_n=None, num_partitions=None, vmem_limit_bytes=None):
    """Pallas TPU focal loss.  x: (N, C) float logits, y: (N, 1) int class ids."""
    assert reduce in ('sum', 'mean')
    # Mirror the PyTorch `if y.shape[0] == 1: y = y.view(-1, 1)` reshape.
    if y.shape[0] == 1:
        y = y.reshape(-1, 1)
    y = y.astype(jnp.int32)
    N, C = x.shape
    assert y.shape == (N, 1)

    if vmem_limit_bytes is None:
        vmem_limit_bytes = _vmem_limit_bytes()
    if num_partitions is None:
        num_partitions = _num_partitions_default()
    if tile_n is None:
        tile_n = _default_tile_n(N, C, x.dtype.itemsize, vmem_limit_bytes)
    assert tile_n % 8 == 0, "row tile must be a multiple of 8 (sublanes)"

    steps_total = pl.cdiv(N, tile_n)
    steps_per_core = pl.cdiv(steps_total, num_partitions)
    last_block = steps_total - 1

    # Clamp the block index so DMAs never go fully out of bounds; the kernel's
    # row mask zeros out any duplicated / padded rows.
    def xy_map(i, j):
        return (jnp.minimum(i * steps_per_core + j, last_block), 0)

    def o_map(i, j):
        return (i, 0, 0)

    kernel = functools.partial(
        _focal_loss_kernel,
        gamma=float(gamma), alpha=float(alpha),
        n_rows=N, tile_n=tile_n, steps_per_core=steps_per_core)

    partials = pl.pallas_call(
        kernel,
        out_shape=jax.ShapeDtypeStruct((num_partitions, 1, 1), jnp.float32),
        grid_spec=pltpu.PrefetchScalarGridSpec(
            num_scalar_prefetch=0,
            grid=(num_partitions, steps_per_core),
            in_specs=[
                pl.BlockSpec((tile_n, C), xy_map),
                pl.BlockSpec((tile_n, 1), xy_map),
            ],
            out_specs=pl.BlockSpec((1, 1, 1), o_map),
            scratch_shapes=[pltpu.VMEM((tile_n, 1), jnp.float32)],
        ),
        compiler_params=pltpu.CompilerParams(
            dimension_semantics=("parallel", "arbitrary"),
            vmem_limit_bytes=int(vmem_limit_bytes),
        ),
    )(x, y)

    total = jnp.sum(partials)
    if reduce == 'mean':
        total = total / jnp.float32(N)
    return total


def _focal_loss_ref(x, y, *, gamma, alpha=1.0, reduce='mean'):
    """Plain-JAX reference matching the PyTorch module."""
    if y.shape[0] == 1:
        y = y.reshape(-1, 1)
    p = jax.nn.softmax(x.astype(jnp.float32), axis=1)
    p_t = jnp.take_along_axis(p, y.astype(jnp.int32), axis=1)
    fl = -alpha * jnp.power(1.0 - p_t, gamma) * jnp.log(p_t)
    return fl.mean() if reduce == 'mean' else fl.sum()


if __name__ == "__main__":
    key = jax.random.PRNGKey(0)

    # Small shapes consistent with the module: batch N, classes C.
    #   (16, 32): aligned batch, integer gamma (multiply path)
    #   (13, 32): ragged batch -> gated tail-row masking
    #   (40, 32): multi-step grid (tile_n=16) + non-integer gamma (pow path)
    cases = [
        (16, 32, 2.0, None),
        (13, 32, 2.0, None),
        (40, 32, 1.5, 16),
    ]
    for (N, C, gamma, tile) in cases:
        kx, ky, key = jax.random.split(key, 3)
        x = jax.random.normal(kx, (N, C), dtype=jnp.float32)
        y = jax.random.randint(ky, (N, 1), 0, C, dtype=jnp.int32)

        for reduce in ("mean", "sum"):
            out = focal_loss(x, y, gamma=gamma, alpha=1.0, reduce=reduce,
                             tile_n=tile)
            out = jax.block_until_ready(out)
            ref = _focal_loss_ref(x, y, gamma=gamma, alpha=1.0, reduce=reduce)
            assert jnp.allclose(out, ref, rtol=1e-5, atol=1e-5), (
                N, C, gamma, reduce, out, ref)

    print("KERNEL_OK")
</pallas_src>

<mosaic_0001>
module attributes {stable_mosaic.version = 11 : i64} {
  func.func @_focal_loss_kernel(%arg0: i32, %arg1: i32, %arg2: memref<16x32xf32, #tpu.memory_space<vmem>>, %arg3: memref<16x1xi32, #tpu.memory_space<vmem>>, %arg4: memref<1x1x1xf32, #tpu.memory_space<vmem>>, %arg5: memref<16x1xf32, #tpu.memory_space<vmem>>) attributes {dimension_semantics = [#tpu.dimension_semantics<parallel>, #tpu.dimension_semantics<arbitrary>], iteration_bounds = array<i64: 1, 1>, scalar_prefetch = 0 : i64, scratch_operands = 1 : i64, tpu.core_type = #tpu.core_type<tc>, window_params = [{transform_indices = @transform_0, window_bounds = array<i64: 16, 32>}, {transform_indices = @transform_1, window_bounds = array<i64: 16, 1>}, {transform_indices = @transform_2, window_bounds = array<i64: 1, 1, 1>}]} {
    %c0_i32 = arith.constant 0 : i32
    %0 = arith.cmpi eq, %arg1, %c0_i32 : i32
    %1 = arith.extui %0 : i1 to i32
    %c0_i32_0 = arith.constant 0 : i32
    %2 = arith.cmpi ne, %1, %c0_i32_0 : i32
    scf.if %2 {
      %cst_18 = arith.constant 0.000000e+00 : f32
      %48 = vector.broadcast %cst_18 : f32 to vector<16x1xf32>
      %c0_19 = arith.constant 0 : index
      %c0_20 = arith.constant 0 : index
      %49 = vector.load %arg5[%c0_19, %c0_20] : memref<16x1xf32, #tpu.memory_space<vmem>>, vector<16x1xf32>
      tpu.vector_store %arg5[%c0_19, %c0_20], %48 {strides = array<i32>} : memref<16x1xf32, #tpu.memory_space<vmem>>, vector<16x1xf32>,
    } else {
    }
    %c0 = arith.constant 0 : index
    %c0_1 = arith.constant 0 : index
    %3 = vector.load %arg2[%c0, %c0_1] : memref<16x32xf32, #tpu.memory_space<vmem>>, vector<16x32xf32>
    %c0_2 = arith.constant 0 : index
    %c0_3 = arith.constant 0 : index
    %4 = vector.load %arg3[%c0_2, %c0_3] : memref<16x1xi32, #tpu.memory_space<vmem>>, vector<16x1xi32>
    %cst = arith.constant dense<0xFF800000> : vector<16xf32>
    %5 = vector.multi_reduction <maximumf>, %3, %cst [1] : vector<16x32xf32> to vector<16xf32>
    %6 = vector.shape_cast %5 : vector<16xf32> to vector<16x1xf32>
    %7 = vector.broadcast %6 : vector<16x1xf32> to vector<16x32xf32>
    %8 = arith.subf %3, %7 : vector<16x32xf32>
    %9 = math.exp %8 : vector<16x32xf32>
    %cst_4 = arith.constant dense<0.000000e+00> : vector<16xf32>
    %10 = vector.multi_reduction <add>, %9, %cst_4 [1] : vector<16x32xf32> to vector<16xf32>
    %11 = vector.shape_cast %10 : vector<16xf32> to vector<16x1xf32>
    %12 = math.log %11 : vector<16x1xf32>
    %13 = arith.addf %6, %12 : vector<16x1xf32>
    %14 = tpu.iota {dimensions = array<i32: 1>} : vector<16x32xi32>
    %15 = vector.broadcast %4 : vector<16x1xi32> to vector<16x32xi32>
    %16 = arith.cmpi eq, %14, %15 : vector<16x32xi32>
    %cst_5 = arith.constant 0.000000e+00 : f32
    %17 = vector.broadcast %cst_5 : f32 to vector<16x32xf32>
    %18 = arith.select %16, %3, %17 : vector<16x32xi1>, vector<16x32xf32>
    %cst_6 = arith.constant dense<0.000000e+00> : vector<16xf32>
    %19 = vector.multi_reduction <add>, %18, %cst_6 [1] : vector<16x32xf32> to vector<16xf32>
    %20 = vector.shape_cast %19 : vector<16xf32> to vector<16x1xf32>
    %21 = arith.subf %20, %13 : vector<16x1xf32>
    %cst_7 = arith.constant 0.000000e+00 : f32
    %22 = vector.broadcast %cst_7 : f32 to vector<16x1xf32>
    %23 = arith.minimumf %21, %22 : vector<16x1xf32>
    %24 = math.exp %23 : vector<16x1xf32>
    %cst_8 = arith.constant 1.000000e+00 : f32
    %25 = vector.broadcast %cst_8 : f32 to vector<16x1xf32>
    %26 = arith.subf %25, %24 : vector<16x1xf32>
    %cst_9 = arith.constant 0.000000e+00 : f32
    %27 = vector.broadcast %cst_9 : f32 to vector<16x1xf32>
    %28 = arith.maximumf %26, %27 : vector<16x1xf32>
    %cst_10 = arith.constant 1.000000e+00 : f32
    %29 = vector.broadcast %cst_10 : f32 to vector<16x1xf32>
    %30 = arith.mulf %29, %28 : vector<16x1xf32>
    %31 = arith.mulf %30, %28 : vector<16x1xf32>
    %cst_11 = arith.constant -1.000000e+00 : f32
    %32 = vector.broadcast %cst_11 : f32 to vector<16x1xf32>
    %33 = arith.mulf %32, %31 : vector<16x1xf32>
    %34 = arith.mulf %33, %23 : vector<16x1xf32>
    %c1_i32 = arith.constant 1 : i32
    %35 = arith.muli %arg0, %c1_i32 : i32
    %36 = arith.addi %35, %arg1 : i32
    %c1_i32_12 = arith.constant 1 : i32
    %37 = arith.addi %36, %c1_i32_12 : i32
    %c16_i32 = arith.constant 16 : i32
    %38 = arith.muli %37, %c16_i32 : i32
    %c16_i32_13 = arith.constant 16 : i32
    %39 = arith.cmpi sgt, %38, %c16_i32_13 : i32
    %true = arith.constant true
    %40 = arith.xori %39, %true : i1
    %41 = arith.extui %40 : i1 to i32
    %c0_i32_14 = arith.constant 0 : i32
    %42 = arith.cmpi ne, %41, %c0_i32_14 : i32
    scf.if %42 {
      %c0_18 = arith.constant 0 : index
      %c0_19 = arith.constant 0 : index
      %48 = vector.load %arg5[%c0_18, %c0_19] : memref<16x1xf32, #tpu.memory_space<vmem>>, vector<16x1xf32>
      %49 = arith.addf %48, %34 : vector<16x1xf32>
      %c0_20 = arith.constant 0 : index
      %c0_21 = arith.constant 0 : index
      %50 = vector.load %arg5[%c0_20, %c0_21] : memref<16x1xf32, #tpu.memory_space<vmem>>, vector<16x1xf32>
      tpu.vector_store %arg5[%c0_20, %c0_21], %49 {strides = array<i32>} : memref<16x1xf32, #tpu.memory_space<vmem>>, vector<16x1xf32>,
    } else {
    }
    %43 = arith.extui %39 : i1 to i32
    %c0_i32_15 = arith.constant 0 : i32
    %44 = arith.cmpi ne, %43, %c0_i32_15 : i32
    scf.if %44 {
      %c16_i32_18 = arith.constant 16 : i32
      %48 = arith.muli %36, %c16_i32_18 : i32
      %49 = tpu.iota {dimensions = array<i32: 0>} : vector<16x1xi32>
      %50 = vector.broadcast %48 : i32 to vector<16x1xi32>
      %51 = arith.addi %50, %49 : vector<16x1xi32>
      %c0_19 = arith.constant 0 : index
      %c0_20 = arith.constant 0 : index
      %52 = vector.load %arg5[%c0_19, %c0_20] : memref<16x1xf32, #tpu.memory_space<vmem>>, vector<16x1xf32>
      %c16_i32_21 = arith.constant 16 : i32
      %53 = vector.broadcast %c16_i32_21 : i32 to vector<16x1xi32>
      %54 = arith.cmpi slt, %51, %53 : vector<16x1xi32>
      %cst_22 = arith.constant 0.000000e+00 : f32
      %55 = vector.broadcast %cst_22 : f32 to vector<16x1xf32>
      %56 = arith.select %54, %34, %55 : vector<16x1xi1>, vector<16x1xf32>
      %57 = arith.addf %52, %56 : vector<16x1xf32>
      %c0_23 = arith.constant 0 : index
      %c0_24 = arith.constant 0 : index
      %58 = vector.load %arg5[%c0_23, %c0_24] : memref<16x1xf32, #tpu.memory_space<vmem>>, vector<16x1xf32>
      tpu.vector_store %arg5[%c0_23, %c0_24], %57 {strides = array<i32>} : memref<16x1xf32, #tpu.memory_space<vmem>>, vector<16x1xf32>,
    } else {
    }
    %c0_i32_16 = arith.constant 0 : i32
    %45 = arith.cmpi eq, %arg1, %c0_i32_16 : i32
    %46 = arith.extui %45 : i1 to i32
    %c0_i32_17 = arith.constant 0 : i32
    %47 = arith.cmpi ne, %46, %c0_i32_17 : i32
    scf.if %47 {
      %c0_18 = arith.constant 0 : index
      %c0_19 = arith.constant 0 : index
      %48 = vector.load %arg5[%c0_18, %c0_19] : memref<16x1xf32, #tpu.memory_space<vmem>>, vector<16x1xf32>
      %cst_20 = arith.constant dense<0.000000e+00> : vector<1xf32>
      %49 = vector.multi_reduction <add>, %48, %cst_20 [0] : vector<16x1xf32> to vector<1xf32>
      %50 = vector.shape_cast %49 : vector<1xf32> to vector<1x1xf32>
      %51 = vector.shape_cast %50 : vector<1x1xf32> to vector<1x1x1xf32>
      %c0_21 = arith.constant 0 : index
      %c0_22 = arith.constant 0 : index
      %c0_23 = arith.constant 0 : index
      %52 = vector.load %arg4[%c0_21, %c0_22, %c0_23] : memref<1x1x1xf32, #tpu.memory_space<vmem>>, vector<1x1x1xf32>
      tpu.vector_store %arg4[%c0_21, %c0_22, %c0_23], %51 {strides = array<i32>} : memref<1x1x1xf32, #tpu.memory_space<vmem>>, vector<1x1x1xf32>,
    } else {
    }
    return
  }
  func.func @transform_0(%arg0: i32, %arg1: i32) -> (i32, i32) {
    %c1_i32 = arith.constant 1 : i32
    %0 = arith.muli %arg0, %c1_i32 : i32
    %1 = arith.addi %0, %arg1 : i32
    %c0_i32 = arith.constant 0 : i32
    %2 = arith.minsi %1, %c0_i32 : i32
    %c0_i32_0 = arith.constant 0 : i32
    %c0_i32_1 = arith.constant 0 : i32
    return %2, %c0_i32_0 : i32, i32
  }
  func.func @transform_1(%arg0: i32, %arg1: i32) -> (i32, i32) {
    %c1_i32 = arith.constant 1 : i32
    %0 = arith.muli %arg0, %c1_i32 : i32
    %1 = arith.addi %0, %arg1 : i32
    %c0_i32 = arith.constant 0 : i32
    %2 = arith.minsi %1, %c0_i32 : i32
    %c0_i32_0 = arith.constant 0 : i32
    %c0_i32_1 = arith.constant 0 : i32
    return %2, %c0_i32_0 : i32, i32
  }
  func.func @transform_2(%arg0: i32, %arg1: i32) -> (i32, i32, i32) {
    %c0_i32 = arith.constant 0 : i32
    %c0_i32_0 = arith.constant 0 : i32
    %c0_i32_1 = arith.constant 0 : i32
    return %arg0, %c0_i32, %c0_i32_0 : i32, i32, i32
  }
}

</mosaic_0001>

<llo_original>
// kernel: tpu_custom_call.1
$region0: #{tpu_custom_call.1}
  #allocation0 [shape = 'u32[]', space=smem, size = 0x4, offset = 0x4, fixed_abs, tag = 'smem constant byte address 0x4 - core index']
  #allocation1 [shape = 'u32[144,128]{1,0:T(1,128)}', space=vmem, size = 0x12000, scoped, tag = 'internal scratch']
  #allocation2 [shape = 'f32[16,1]{1,0:T(8,128)}', space=vmem, size = 0x2000, scoped, tag = 'scratch operand']
  %s0 = inlined_call_operand.vmem [shape: f32[16,32], index: 0, kind: input, shape index: {}]
  %s1 = inlined_call_operand.vmem [shape: s32[16,1], index: 1, kind: input, shape index: {}]
  %s2 = inlined_call_operand.hbm [shape: f32[1,1,1], index: 2, kind: output, shape index: {}]
  %s3 = sld [smem:[#allocation0]]
  $region34: #{tpu_custom_call.1} parent=0
    _
  %s5 = ssub.s32 1, %s3
  %s6 = scalar_select 0, %s5, %s3
  $region1: #{tpu_custom_call.1} parent=0
    #allocation3 [shape = 'u8[512]{0}', space=vmem, size = 0x400, scoped, tag = 'output window, operand 0, single buffered']
    #allocation4 [shape = 's32[1]{0}', space=sflag, size = 0x4, scoped, tag = 'scoped memory for tpu_custom_call.1']
    %7 = vsyncpa [#allocation4], 0
    // Predicated region
    $region2: #{tpu_custom_call.1} parent=1 // pred_check
      _
    $region3: #{tpu_custom_call.1} parent=1 // pred_check_branch
      %9 = sbr.rel (0) target = $region5
    $region4: #{tpu_custom_call.1} parent=1 // pred_region
      %s10 = sadd.s32 0, 0
      %p11 = scmp.lt.s32.totalorder %s10, 0
      %s12 = scalar_select %p11, %s10, 0
      %s13 = smul.u32 2, %s12
      %p14 = scmp.lt.s32.totalorder %s13, 1
      %s15 = scalar_select %p14, %s13, 1
      %s16 = smul.addr %s15, 8
      %s17 = scalar_lea.vmem %s0, %s16
      %s18 = sadd.s32 0, 0
      %p19 = scmp.lt.s32.totalorder %s18, 0
      %s20 = scalar_select %p19, %s18, 0
      %s21 = smul.u32 2, %s20
    $region5: #{tpu_custom_call.1} parent=1 // pred_fallthru
      _
    // Predicated region
    $region6: #{tpu_custom_call.1} parent=1 // pred_check
      _
    $region7: #{tpu_custom_call.1} parent=1 // pred_check_branch
      %23 = sbr.rel (0) target = $region9
    $region8: #{tpu_custom_call.1} parent=1 // pred_region
      %s24 = sadd.s32 0, 0
      %p25 = scmp.lt.s32.totalorder %s24, 0
      %s26 = scalar_select %p25, %s24, 0
      %s27 = smul.u32 2, %s26
      %p28 = scmp.lt.s32.totalorder %s27, 1
      %s29 = scalar_select %p28, %s27, 1
      %s30 = smul.addr %s29, 8
      %s31 = scalar_lea.vmem %s1, %s30
      %s32 = sadd.s32 0, 0
      %p33 = scmp.lt.s32.totalorder %s32, 0
      %s34 = scalar_select %p33, %s32, 0
      %s35 = smul.u32 2, %s34
    $region9: #{tpu_custom_call.1} parent=1 // pred_fallthru
      _
    %s36 = sadd.s32 0, 0
    %p37 = scmp.lt.s32.totalorder %s36, 0
    %s38 = scalar_select %p37, %s36, 0
    %s39 = smul.u32 2, %s38
    %p40 = scmp.lt.s32.totalorder %s39, 1
    %s41 = scalar_select %p40, %s39, 1
    %s42 = smul.addr %s41, 8
    %s43 = scalar_lea.vmem %s0, %s42
    %s44 = sadd.s32 0, 0
    %p45 = scmp.lt.s32.totalorder %s44, 0
    %s46 = scalar_select %p45, %s44, 0
    %s47 = smul.u32 2, %s46
    %p48 = scmp.lt.s32.totalorder %s47, 1
    %s49 = scalar_select %p48, %s47, 1
    %s50 = smul.addr %s49, 8
    %s51 = scalar_lea.vmem %s1, %s50
    %s52 = sadd.s32 0, 0
    %p53 = scmp.lt.s32.totalorder %s52, 0
    %s54 = scalar_select %p53, %s52, 0
    %s55 = smul.u32 2, %s54
    %p56 = scmp.lt.s32.totalorder %s55, 1
    %s57 = scalar_select %p56, %s55, 1
    %s58 = smul.addr %s57, 8
    %s59 = scalar_lea.vmem %s0, %s58
    %s60 = sadd.s32 0, 0
    %p61 = scmp.lt.s32.totalorder %s60, 0
    %s62 = scalar_select %p61, %s60, 0
    %s63 = smul.u32 2, %s62
    %s64 = sadd.s32 0, 0
    %p65 = scmp.lt.s32.totalorder %s64, 0
    %s66 = scalar_select %p65, %s64, 0
    %s67 = smul.u32 2, %s66
    %p68 = scmp.lt.s32.totalorder %s67, 1
    %s69 = scalar_select %p68, %s67, 1
    %s70 = smul.addr %s69, 8
    %s71 = scalar_lea.vmem %s1, %s70
    %s72 = sadd.s32 0, 0
    %p73 = scmp.lt.s32.totalorder %s72, 0
    %s74 = scalar_select %p73, %s72, 0
    %s75 = smul.u32 2, %s74
    %p76 = scmp.eq.s32.totalorder 0, 0
    // Predicated region
    $region10: #{tpu_custom_call.1} parent=1 // pred_check
      %p77 = pneg %p76
    $region11: #{tpu_custom_call.1} parent=1 // pred_check_branch
      %79 = sbr.rel (%p77) target = $region13
    $region12: #{tpu_custom_call.1} parent=1 // pred_region
      %vm80 = vcmask 7168
      %81 = vst.msk [vmem:[#allocation2] sm:$0xff] %vm80, 0.0
      %82 = vst.msk [vmem:[#allocation2 + $0x8] sm:$0xff] %vm80, 0.0
    $region13: #{tpu_custom_call.1} parent=1 // pred_fallthru
      _
    %v83 = vld [vmem:[%s59] sm:$0xff]
    %v84 = vld [vmem:[%s59 + $0x8] sm:$0xff]
    %v85 = vld [vmem:[%s71] sm:$0xff]
    %v86 = vld [vmem:[%s71 + $0x8] sm:$0xff]
    %vm87 = vcmask 261120
    %v88 = vsel %vm87, %v83, -inf
    %89 = vmax.xlane.f32.xlu0 %v88
    %v90 = vpop.xlane.xlu0 %89
    %v91 = vsel %vm87, %v84, -inf
    %92 = vmax.xlane.f32.xlu0 %v91
    %v93 = vpop.xlane.xlu0 %92
    %v94 = vsub.f32 %v83, %v90
    %v95 = vsub.f32 %v84, %v93
    %v96 = vmul.f32 %v94, 1.442695
    %v97 = vpow.pop %v96
    %v98 = vmul.f32 %v95, 1.442695
    %v99 = vpow.pop %v98
    %v100 = vsel %vm87, %v97, 0.0
    %101 = vadd.xlane.f32.xlu0 %v100
    %v102 = vpop.xlane.xlu0 %101
    %v103 = vsel %vm87, %v99, 0.0
    %104 = vadd.xlane.f32.xlu0 %v103
    %v105 = vpop.xlane.xlu0 %104
    %v106 = vlog2.pop %v102
    %v107 = vmul.f32 %v106, 0.6931472
    %v108 = vlog2.pop %v105
    %v109 = vmul.f32 %v108, 0.6931472
    %v110 = vadd.f32 %v90, %v107
    %v111 = vadd.f32 %v93, %v109
    %v112 = vlaneseq
    %v113 = vand.u32 %v112, 127
    %114 = vset.pattern.permute.xlu0 0
    %115 = vperm.xlu0 %114, %v85
    %v116 = vpop.permute.xlu0 %115
    %117 = vset.pattern.permute.xlu0 0
    %118 = vperm.xlu0 %117, %v86
    %v119 = vpop.permute.xlu0 %118
    %vm120 = vcmp.eq.s32.totalorder %v113, %v116
    %vm121 = vcmp.eq.s32.totalorder %v113, %v119
    %v122 = vsel %vm120, %v83, 0.0
    %v123 = vsel %vm121, %v84, 0.0
    %v124 = vsel %vm87, %v122, 0.0
    %125 = vadd.xlane.f32.xlu0 %v124
    %v126 = vpop.xlane.xlu0 %125
    %v127 = vsel %vm87, %v123, 0.0
    %128 = vadd.xlane.f32.xlu0 %v127
    %v129 = vpop.xlane.xlu0 %128
    %v130 = vsub.f32 %v126, %v110
    %v131 = vsub.f32 %v129, %v111
    %v132 = vmin.f32 %v130, 0.0
    %v133 = vmin.f32 %v131, 0.0
    %v134 = vmul.f32 %v132, 1.442695
    %v135 = vpow.pop %v134
    %v136 = vmul.f32 %v133, 1.442695
    %v137 = vpow.pop %v136
    %v138 = vsub.f32 1.0, %v135
    %v139 = vsub.f32 1.0, %v137
    %v140 = vmax.f32 %v138, 0.0
    %v141 = vmax.f32 %v139, 0.0
    %v142 = vmul.f32 %v140, %v140
    %v143 = vmul.f32 %v141, %v141
    %v144 = vmul.f32 %v142, -1.0
    %v145 = vmul.f32 %v143, -1.0
    %v146 = vmul.f32 %v144, %v132
    %v147 = vmul.f32 %v145, %v133
    %s148 = sadd.s32 0, 0
    %s149 = sadd.s32 %s148, 1
    %s150 = smul.u32 %s149, 16
    %p151 = scmp.gt.s32.totalorder %s150, 16
    %p152 = scmp.le.s32.totalorder %s150, 16
    // Predicated region
    $region14: #{tpu_custom_call.1} parent=1 // pred_check
      %p153 = pneg %p152
    $region15: #{tpu_custom_call.1} parent=1 // pred_check_branch
      %155 = sbr.rel (%p153) target = $region17
    $region16: #{tpu_custom_call.1} parent=1 // pred_region
      %v156 = vld [vmem:[#allocation2] sm:$0xff]
      %v157 = vld [vmem:[#allocation2 + $0x8] sm:$0xff]
      %v158 = vadd.f32 %v156, %v146
      %v159 = vadd.f32 %v157, %v147
      %vm160 = vcmask 7168
      %161 = vst.msk [vmem:[#allocation2] sm:$0xff] %vm160, %v158
      %162 = vst.msk [vmem:[#allocation2 + $0x8] sm:$0xff] %vm160, %v159
    $region17: #{tpu_custom_call.1} parent=1 // pred_fallthru
      _
    // Predicated region
    $region18: #{tpu_custom_call.1} parent=1 // pred_check
      %p163 = pneg %p151
    $region19: #{tpu_custom_call.1} parent=1 // pred_check_branch
      %165 = sbr.rel (%p163) target = $region21
    $region20: #{tpu_custom_call.1} parent=1 // pred_region
      %s166 = smul.u32 %s148, 16
      %v167 = vlaneseq
      %v168 = vshrl.u32 %v167, 7
      %v169 = vadd.s32 %v168, 8
      %v170 = vstv %s166
      %v171 = vadd.s32 %v170, %v168
      %v172 = vadd.s32 %v170, %v169
      %v173 = vld [vmem:[#allocation2] sm:$0xff]
      %v174 = vld [vmem:[#allocation2 + $0x8] sm:$0xff]
      %vm175 = vcmp.lt.s32.totalorder %v171, 16
      %vm176 = vcmp.lt.s32.totalorder %v172, 16
      %v177 = vsel %vm175, %v146, 0.0
      %v178 = vsel %vm176, %v147, 0.0
      %v179 = vadd.f32 %v173, %v177
      %v180 = vadd.f32 %v174, %v178
      %vm181 = vcmask 7168
      %182 = vst.msk [vmem:[#allocation2] sm:$0xff] %vm181, %v179
      %183 = vst.msk [vmem:[#allocation2 + $0x8] sm:$0xff] %vm181, %v180
    $region21: #{tpu_custom_call.1} parent=1 // pred_fallthru
      _
    // Predicated region
    $region22: #{tpu_custom_call.1} parent=1 // pred_check
      %p184 = pneg %p76
    $region23: #{tpu_custom_call.1} parent=1 // pred_check_branch
      %186 = sbr.rel (%p184) target = $region25
    $region24: #{tpu_custom_call.1} parent=1 // pred_region
      %v187 = vld [vmem:[#allocation2] sm:$0xff]
      %v188 = vld [vmem:[#allocation2 + $0x8] sm:$0xff]
      %vm189 = vcmask 7168
      %v190 = vsel %vm189, %v187, 0.0
      %v191 = vsel %vm189, %v188, 0.0
      %v192 = vadd.f32 %v190, %v191
      %v193 = vrot.slane %v192, 4
      %v194 = vadd.f32 %v192, %v193
      %v195 = vrot.slane %v194, 2
      %v196 = vadd.f32 %v194, %v195
      %v197 = vrot.slane %v196, 1
      %v198 = vadd.f32 %v196, %v197
      %vm199 = vcmask 0
      %200 = vst.msk [vmem:[#allocation3] sm:$0x1] %vm199, %v198
    $region25: #{tpu_custom_call.1} parent=1 // pred_fallthru
      _
    // Predicated region
    $region26: #{tpu_custom_call.1} parent=1 // pred_check
      _
    $region27: #{tpu_custom_call.1} parent=1 // pred_check_branch
      %202 = sbr.rel (0) target = $region29
    $region28: #{tpu_custom_call.1} parent=1 // pred_region
      %s204 = ssub.s32 16, 16
      %205 = vsyncadd [#allocation4], %s204
      %s207 = sshll.u32 [#allocation3], 4
      %s208 = int_to_ptr.vmem [resolvable:$true] %s207
      %210 = dma.vmem_to_hbm [thread:$0]  %s208, 16, %s2, [#allocation4]
    $region29: #{tpu_custom_call.1} parent=1 // pred_fallthru
      _
    // Predicated region
    $region30: #{tpu_custom_call.1} parent=1 // pred_check
      _
    $region31: #{tpu_custom_call.1} parent=1 // pred_check_branch
      %212 = sbr.rel (0) target = $region33
    $region32: #{tpu_custom_call.1} parent=1 // pred_region
      %213 = dma.done [#allocation4], 16
    $region33: #{tpu_custom_call.1} parent=1 // pred_fallthru
      _
    %214 = vsyncpa [#allocation4], 1

</llo_original>
